<compile_context>
chip_gen: v7x
topology: tpu7x:2x2x1
jax: 0.10.0
libtpu: 0.0.40
codegen_flags: <defaults>
</compile_context>

<pallas_src>
import functools

import jax
import jax.numpy as jnp
from jax.experimental import pallas as pl
from jax.experimental.pallas import tpu as pltpu

WEIGHTS = (2.0, 1.0, 1.0)        # from loss_func(weights=[2, 1, 1])
IGNORE_INDEX = -100              # F.cross_entropy default ignore_index


def _round_up(x: int, m: int) -> int:
    return (x + m - 1) // m * m


@functools.lru_cache(maxsize=None)
def _tpu_generation_params():
    """Returns (num_splits, vmem_limit_bytes, block_budget_bytes) per TPU generation."""
    kind = ""
    try:
        kind = jax.devices()[0].device_kind.lower()
    except Exception:
        pass
    vmem_cap = None
    try:
        vmem_cap = int(pltpu.get_tpu_info().vmem_capacity_bytes)
    except Exception:
        pass

    is_v7 = ("v7" in kind) or ("tpu7" in kind) or (
        vmem_cap is not None and vmem_cap <= 80 * 1024 * 1024)
    if is_v7:
        # 64 MiB VMEM / 2 TensorCores per chip: tighter scoped limit, 4 MiB input
        # blocks, split the rows so both TCs own a partial sum.
        return 2, 44 * 1024 * 1024, 4 * 1024 * 1024

    is_v5_v6 = ("v5" in kind) or ("v6" in kind) or (
        vmem_cap is not None and vmem_cap >= 96 * 1024 * 1024)
    if is_v5_v6:
        # 128 MiB physical VMEM, single TensorCore: big blocks, no split-axis work.
        return 1, 64 * 1024 * 1024, 8 * 1024 * 1024

    # Unknown chip: conservative defaults.
    return 1, 32 * 1024 * 1024, 4 * 1024 * 1024


def _choose_tile_n(total_rows: int, n_classes: int, itemsize: int,
                   num_splits: int, block_budget_bytes: int,
                   vmem_limit_bytes: int) -> int:
    lane_c = max(n_classes, 128)
    # Native sublane packing: f32 -> 8 rows/vreg, bf16 -> 16, int8/fp8 -> 32.
    row_align = 8 * max(1, 4 // max(1, itemsize))
    # Target: the logits input block alone uses ~block_budget_bytes.
    tile_n = block_budget_bytes // (lane_c * itemsize)
    # Full per-row VMEM accounting: 2x double-buffered logits + sidecar, ~3 full-tile
    # f32 temporaries (x-m upcast, exp, masked pick) and the per-row f32 accumulator.
    bytes_per_row = (2 * lane_c * itemsize      # logits block, double buffered
                     + 2 * 128 * 4              # (label, weight) sidecar, double buffered
                     + 3 * lane_c * 4           # f32 temporaries in the kernel
                     + 128 * 4)                 # (tile_n, 1) accumulator scratch
    tile_n = min(tile_n, (vmem_limit_bytes * 3 // 4) // bytes_per_row)
    per_split = _round_up(max(1, -(-total_rows // num_splits)), row_align)
    tile_n = min(tile_n, per_split)
    tile_n = max(row_align, tile_n // row_align * row_align)
    return int(tile_n)


def _weighted_ce_kernel(x_ref, side_ref, out_ref, acc_ref):
    """One (tile_n, C) row block; accumulates w[n]*nll[n] per row into acc_ref."""
    j = pl.program_id(1)

    @pl.when(j == 0)
    def _init():
        acc_ref[...] = jnp.zeros_like(acc_ref)

    x = x_ref[...].astype(jnp.float32)                        # (tile_n, C), bf16 upcast here
    y = side_ref[:, 0:1]                                      # (tile_n, 1) int32 labels
    w = pltpu.bitcast(side_ref[:, 1:2], jnp.float32)          # (tile_n, 1) f32 per-row weight

    n_classes = x.shape[-1]
    # Row max on the XLU; the two class-axis sums go to the MXU (ones-column matmul).
    m = jnp.max(x, axis=-1, keepdims=True)                    # (tile_n, 1)
    xm = x - m                                                 # reused for exp and the pick
    e = jnp.exp(xm)
    ones_c = jnp.ones((n_classes, 1), jnp.float32)
    sum_e = jnp.dot(e, ones_c, preferred_element_type=jnp.float32)          # (tile_n, 1)

    # One-hot lane pick: broadcast a (1, C) iota against (tile_n, 1) labels.
    cls = jax.lax.broadcasted_iota(jnp.int32, (1, n_classes), 1)
    picked_xm = jnp.dot(jnp.where(cls == y, xm, 0.0), ones_c,
                        preferred_element_type=jnp.float32)                  # (tile_n, 1)

    # nll = lse - x[n, y] = (log(sum_e) + m) - (picked_xm + m)
    nll = jnp.log(sum_e) - picked_xm                           # (tile_n, 1)
    acc_ref[...] += w * nll

    @pl.when(j == pl.num_programs(1) - 1)
    def _finalize():
        out_ref[...] = jnp.sum(acc_ref[...], axis=0, keepdims=True)[None]    # (1, 1, 1)


@jax.jit
def weighted_cross_entropy_loss(xs, ys):
    """xs: (P, N, C) float logits (f32 or bf16); ys: (P, N) int labels -> scalar f32."""
    P, N, C = xs.shape
    assert ys.shape == (P, N)
    assert P <= len(WEIGHTS)

    num_splits, vmem_limit, block_budget = _tpu_generation_params()

    labels = ys.astype(jnp.int32)                              # (P, N)
    valid = labels != IGNORE_INDEX
    counts = jnp.maximum(jnp.sum(valid, axis=1), 1).astype(jnp.float32)      # (P,)
    w_terms = jnp.asarray(WEIGHTS, jnp.float32)[:P]
    w_rows = (w_terms / counts)[:, None] * valid.astype(jnp.float32)         # (P, N)
    labels_safe = jnp.where(valid, labels, 0)

    total = P * N
    itemsize = xs.dtype.itemsize
    tile_n = _choose_tile_n(total, C, itemsize, num_splits, block_budget, vmem_limit)
    rows_pad = _round_up(total, num_splits * tile_n)
    tiles_per_split = rows_pad // (num_splits * tile_n)

    x2 = xs.reshape(total, C)                                  # no f32 upcast in the wrapper
    side = jnp.stack(
        [labels_safe.reshape(total),
         jax.lax.bitcast_convert_type(w_rows.reshape(total), jnp.int32)],
        axis=1)                                                # (total, 2) int32

    if rows_pad != total:
        pad = rows_pad - total
        x2 = jnp.pad(x2, ((0, pad), (0, 0)))                   # zero logits (finite, weight 0)
        side = jnp.pad(side, ((0, pad), (0, 0)))               # label 0, weight bits 0 -> 0.0

    cost = pl.CostEstimate(
        flops=int(rows_pad) * int(C) * 6,
        transcendentals=int(rows_pad) * (int(C) + 1),
        bytes_accessed=int(rows_pad) * int(C) * itemsize + int(rows_pad) * 8
        + num_splits * 4,
    )

    partial = pl.pallas_call(
        _weighted_ce_kernel,
        out_shape=jax.ShapeDtypeStruct((num_splits, 1, 1), jnp.float32),
        grid_spec=pltpu.PrefetchScalarGridSpec(
            num_scalar_prefetch=0,
            grid=(num_splits, tiles_per_split),
            in_specs=[
                pl.BlockSpec((tile_n, C), lambda i, j: (i * tiles_per_split + j, 0)),
                pl.BlockSpec((tile_n, 2), lambda i, j: (i * tiles_per_split + j, 0)),
            ],
            out_specs=pl.BlockSpec((1, 1, 1), lambda i, j: (i, 0, 0)),
            scratch_shapes=[pltpu.VMEM((tile_n, 1), jnp.float32)],
        ),
        compiler_params=pltpu.CompilerParams(
            dimension_semantics=("parallel", "arbitrary"),
            vmem_limit_bytes=vmem_limit,
        ),
        cost_estimate=cost,
    )(x2, side)

    # Tiny (num_splits,) reduction in XLA combines the per-core partial sums.
    return jnp.sum(partial)


def loss_func_forward(xs, *ys):
    """Mirrors loss_func.forward(xs, *ys) where xs/ys are sequences of per-term arrays."""
    return weighted_cross_entropy_loss(jnp.stack(list(xs)), jnp.stack(list(ys)))


def _reference_loss(xs, ys):
    # pure-JAX reference: sum_i WEIGHTS[i] * mean(-log softmax(x_i)[y_i])
    total = jnp.float32(0.0)
    for i in range(xs.shape[0]):
        x = xs[i].astype(jnp.float32)
        y = ys[i].astype(jnp.int32)
        logp = jax.nn.log_softmax(x, axis=-1)
        nll = -jnp.take_along_axis(logp, y[:, None], axis=-1)[:, 0]
        total = total + WEIGHTS[i] * jnp.mean(nll)
    return total


if __name__ == "__main__":
    key = jax.random.PRNGKey(0)
    P, N, C = 3, 8, 32                                  # 3 loss terms, batch=8, classes=32
    kx, ky = jax.random.split(key)
    xs = jax.random.normal(kx, (P, N, C), dtype=jnp.float32)
    ys = jax.random.randint(ky, (P, N), 0, C, dtype=jnp.int32)

    # f32 logits path
    loss = jax.block_until_ready(weighted_cross_entropy_loss(xs, ys))
    ref = jax.block_until_ready(_reference_loss(xs, ys))
    assert jnp.allclose(loss, ref, rtol=1e-5, atol=1e-5), (loss, ref)

    # module-style call (list of tensors + *targets)
    loss_mod = jax.block_until_ready(loss_func_forward(list(xs), *list(ys)))
    assert jnp.allclose(loss_mod, ref, rtol=1e-5, atol=1e-5), (loss_mod, ref)

    # bf16 logits stay bf16 in HBM; the kernel upcasts per tile.
    xs_bf16 = xs.astype(jnp.bfloat16)
    loss_bf16 = jax.block_until_ready(weighted_cross_entropy_loss(xs_bf16, ys))
    ref_bf16 = jax.block_until_ready(_reference_loss(xs_bf16.astype(jnp.float32), ys))
    assert jnp.allclose(loss_bf16, ref_bf16, rtol=1e-4, atol=1e-4), (loss_bf16, ref_bf16)

    print("KERNEL_OK")
</pallas_src>

<mosaic_0001>
module attributes {stable_mosaic.version = 11 : i64} {
  func.func @_weighted_ce_kernel(%arg0: i32, %arg1: i32, %arg2: memref<24x32xf32, #tpu.memory_space<vmem>>, %arg3: memref<24x2xi32, #tpu.memory_space<vmem>>, %arg4: memref<1x1x1xf32, #tpu.memory_space<vmem>>, %arg5: memref<24x1xf32, #tpu.memory_space<vmem>>) attributes {dimension_semantics = [#tpu.dimension_semantics<parallel>, #tpu.dimension_semantics<arbitrary>], iteration_bounds = array<i64: 1, 1>, scalar_prefetch = 0 : i64, scratch_operands = 1 : i64, tpu.core_type = #tpu.core_type<tc>, window_params = [{transform_indices = @transform_0, window_bounds = array<i64: 24, 32>}, {transform_indices = @transform_1, window_bounds = array<i64: 24, 2>}, {transform_indices = @transform_2, window_bounds = array<i64: 1, 1, 1>}]} {
    %c0_i32 = arith.constant 0 : i32
    %0 = arith.cmpi eq, %arg1, %c0_i32 : i32
    %1 = arith.extui %0 : i1 to i32
    %c0_i32_0 = arith.constant 0 : i32
    %2 = arith.cmpi ne, %1, %c0_i32_0 : i32
    scf.if %2 {
      %cst_15 = arith.constant 0.000000e+00 : f32
      %30 = vector.broadcast %cst_15 : f32 to vector<24x1xf32>
      %c0_16 = arith.constant 0 : index
      %c0_17 = arith.constant 0 : index
      %31 = vector.load %arg5[%c0_16, %c0_17] : memref<24x1xf32, #tpu.memory_space<vmem>>, vector<24x1xf32>
      tpu.vector_store %arg5[%c0_16, %c0_17], %30 {strides = array<i32>} : memref<24x1xf32, #tpu.memory_space<vmem>>, vector<24x1xf32>,
    } else {
    }
    %c0 = arith.constant 0 : index
    %c0_1 = arith.constant 0 : index
    %3 = vector.load %arg2[%c0, %c0_1] : memref<24x32xf32, #tpu.memory_space<vmem>>, vector<24x32xf32>
    %c0_2 = arith.constant 0 : index
    %c0_3 = arith.constant 0 : index
    %4 = vector.load %arg3[%c0_2, %c0_3] : memref<24x2xi32, #tpu.memory_space<vmem>>, vector<24x1xi32>
    %c0_4 = arith.constant 0 : index
    %c1 = arith.constant 1 : index
    %5 = vector.load %arg3[%c0_4, %c1] : memref<24x2xi32, #tpu.memory_space<vmem>>, vector<24x1xi32>
    %6 = tpu.bitcast %5 : vector<24x1xi32> -> vector<24x1xf32>
    %cst = arith.constant dense<0xFF800000> : vector<24xf32>
    %7 = vector.multi_reduction <maximumf>, %3, %cst [1] : vector<24x32xf32> to vector<24xf32>
    %8 = vector.shape_cast %7 : vector<24xf32> to vector<24x1xf32>
    %9 = vector.broadcast %8 : vector<24x1xf32> to vector<24x32xf32>
    %10 = arith.subf %3, %9 : vector<24x32xf32>
    %11 = math.exp %10 : vector<24x32xf32>
    %cst_5 = arith.constant 1.000000e+00 : f32
    %12 = vector.broadcast %cst_5 : f32 to vector<32x1xf32>
    %cst_6 = arith.constant dense<0.000000e+00> : vector<24x1xf32>
    %13 = tpu.matmul %11, %12, %cst_6 {dimension_numbers = #tpu.dot_dimension_numbers<[1], [0], [0], [1], [0, 0, 1, 1], [], []>} : vector<24x32xf32>, vector<32x1xf32>, vector<24x1xf32> -> vector<24x1xf32>
    %14 = tpu.iota {dimensions = array<i32: 1>} : vector<1x32xi32>
    %15 = vector.broadcast %14 : vector<1x32xi32> to vector<24x32xi32>
    %16 = vector.broadcast %4 : vector<24x1xi32> to vector<24x32xi32>
    %17 = arith.cmpi eq, %15, %16 : vector<24x32xi32>
    %cst_7 = arith.constant 0.000000e+00 : f32
    %18 = vector.broadcast %cst_7 : f32 to vector<24x32xf32>
    %19 = arith.select %17, %10, %18 : vector<24x32xi1>, vector<24x32xf32>
    %cst_8 = arith.constant dense<0.000000e+00> : vector<24x1xf32>
    %20 = tpu.matmul %19, %12, %cst_8 {dimension_numbers = #tpu.dot_dimension_numbers<[1], [0], [0], [1], [0, 0, 1, 1], [], []>} : vector<24x32xf32>, vector<32x1xf32>, vector<24x1xf32> -> vector<24x1xf32>
    %21 = math.log %13 : vector<24x1xf32>
    %22 = arith.subf %21, %20 : vector<24x1xf32>
    %c0_9 = arith.constant 0 : index
    %c0_10 = arith.constant 0 : index
    %23 = vector.load %arg5[%c0_9, %c0_10] : memref<24x1xf32, #tpu.memory_space<vmem>>, vector<24x1xf32>
    %24 = arith.mulf %6, %22 : vector<24x1xf32>
    %25 = arith.addf %23, %24 : vector<24x1xf32>
    %c0_11 = arith.constant 0 : index
    %c0_12 = arith.constant 0 : index
    %26 = vector.load %arg5[%c0_11, %c0_12] : memref<24x1xf32, #tpu.memory_space<vmem>>, vector<24x1xf32>
    tpu.vector_store %arg5[%c0_11, %c0_12], %25 {strides = array<i32>} : memref<24x1xf32, #tpu.memory_space<vmem>>, vector<24x1xf32>,
    %c0_i32_13 = arith.constant 0 : i32
    %27 = arith.cmpi eq, %arg1, %c0_i32_13 : i32
    %28 = arith.extui %27 : i1 to i32
    %c0_i32_14 = arith.constant 0 : i32
    %29 = arith.cmpi ne, %28, %c0_i32_14 : i32
    scf.if %29 {
      %c0_15 = arith.constant 0 : index
      %c0_16 = arith.constant 0 : index
      %30 = vector.load %arg5[%c0_15, %c0_16] : memref<24x1xf32, #tpu.memory_space<vmem>>, vector<24x1xf32>
      %cst_17 = arith.constant dense<0.000000e+00> : vector<1xf32>
      %31 = vector.multi_reduction <add>, %30, %cst_17 [0] : vector<24x1xf32> to vector<1xf32>
      %32 = vector.shape_cast %31 : vector<1xf32> to vector<1x1xf32>
      %33 = vector.shape_cast %32 : vector<1x1xf32> to vector<1x1x1xf32>
      %c0_18 = arith.constant 0 : index
      %c0_19 = arith.constant 0 : index
      %c0_20 = arith.constant 0 : index
      %34 = vector.load %arg4[%c0_18, %c0_19, %c0_20] : memref<1x1x1xf32, #tpu.memory_space<vmem>>, vector<1x1x1xf32>
      tpu.vector_store %arg4[%c0_18, %c0_19, %c0_20], %33 {strides = array<i32>} : memref<1x1x1xf32, #tpu.memory_space<vmem>>, vector<1x1x1xf32>,
    } else {
    }
    return
  }
  func.func @transform_0(%arg0: i32, %arg1: i32) -> (i32, i32) {
    %c1_i32 = arith.constant 1 : i32
    %0 = arith.muli %arg0, %c1_i32 : i32
    %1 = arith.addi %0, %arg1 : i32
    %c0_i32 = arith.constant 0 : i32
    %c0_i32_0 = arith.constant 0 : i32
    return %1, %c0_i32 : i32, i32
  }
  func.func @transform_1(%arg0: i32, %arg1: i32) -> (i32, i32) {
    %c1_i32 = arith.constant 1 : i32
    %0 = arith.muli %arg0, %c1_i32 : i32
    %1 = arith.addi %0, %arg1 : i32
    %c0_i32 = arith.constant 0 : i32
    %c0_i32_0 = arith.constant 0 : i32
    return %1, %c0_i32 : i32, i32
  }
  func.func @transform_2(%arg0: i32, %arg1: i32) -> (i32, i32, i32) {
    %c0_i32 = arith.constant 0 : i32
    %c0_i32_0 = arith.constant 0 : i32
    %c0_i32_1 = arith.constant 0 : i32
    return %arg0, %c0_i32, %c0_i32_0 : i32, i32, i32
  }
}

</mosaic_0001>

<llo_original>
// kernel: weighted_cross_entropy_loss.1
$region0: #{weighted_cross_entropy_loss.1}
  #allocation0 [shape = 'u32[]', space=smem, size = 0x4, offset = 0x4, fixed_abs, tag = 'smem constant byte address 0x4 - core index']
  #allocation1 [shape = 'u32[144,128]{1,0:T(1,128)}', space=vmem, size = 0x12000, scoped, tag = 'internal scratch']
  #allocation2 [shape = 'f32[24,1]{1,0:T(8,128)}', space=vmem, size = 0x3000, scoped, tag = 'scratch operand']
  %s0 = inlined_call_operand.vmem [shape: f32[24,32], index: 0, kind: input, shape index: {}]
  %s1 = inlined_call_operand.vmem [shape: s32[24,2], index: 1, kind: input, shape index: {}]
  %s2 = inlined_call_operand.hbm [shape: f32[1,1,1], index: 2, kind: output, shape index: {}]
  %s3 = sld [smem:[#allocation0]]
  $region26: #{weighted_cross_entropy_loss.1} parent=0
    _
  %s5 = ssub.s32 1, %s3
  %s6 = scalar_select 0, %s5, %s3
  $region1: #{weighted_cross_entropy_loss.1} parent=0
    #allocation3 [shape = 'u8[512]{0}', space=vmem, size = 0x400, scoped, tag = 'output window, operand 0, single buffered']
    #allocation4 [shape = 's32[1]{0}', space=sflag, size = 0x4, scoped, tag = 'scoped memory for weighted_cross_entropy_loss.1']
    %7 = vsyncpa [#allocation4], 0
    // Predicated region
    $region2: #{weighted_cross_entropy_loss.1} parent=1 // pred_check
      _
    $region3: #{weighted_cross_entropy_loss.1} parent=1 // pred_check_branch
      %9 = sbr.rel (0) target = $region5
    $region4: #{weighted_cross_entropy_loss.1} parent=1 // pred_region
      %s10 = sadd.s32 0, 0
      %s11 = smul.u32 3, %s10
      %p12 = scmp.lt.s32.totalorder %s11, 2
      %s13 = scalar_select %p12, %s11, 2
      %s14 = smul.addr %s13, 8
      %s15 = scalar_lea.vmem %s0, %s14
      %s16 = sadd.s32 0, 0
      %s17 = smul.u32 3, %s16
    $region5: #{weighted_cross_entropy_loss.1} parent=1 // pred_fallthru
      _
    // Predicated region
    $region6: #{weighted_cross_entropy_loss.1} parent=1 // pred_check
      _
    $region7: #{weighted_cross_entropy_loss.1} parent=1 // pred_check_branch
      %19 = sbr.rel (0) target = $region9
    $region8: #{weighted_cross_entropy_loss.1} parent=1 // pred_region
      %s20 = sadd.s32 0, 0
      %s21 = smul.u32 3, %s20
      %p22 = scmp.lt.s32.totalorder %s21, 2
      %s23 = scalar_select %p22, %s21, 2
      %s24 = smul.addr %s23, 8
      %s25 = scalar_lea.vmem %s1, %s24
      %s26 = sadd.s32 0, 0
      %s27 = smul.u32 3, %s26
    $region9: #{weighted_cross_entropy_loss.1} parent=1 // pred_fallthru
      _
    %s28 = sadd.s32 0, 0
    %s29 = smul.u32 3, %s28
    %p30 = scmp.lt.s32.totalorder %s29, 2
    %s31 = scalar_select %p30, %s29, 2
    %s32 = smul.addr %s31, 8
    %s33 = scalar_lea.vmem %s0, %s32
    %s34 = sadd.s32 0, 0
    %s35 = smul.u32 3, %s34
    %p36 = scmp.lt.s32.totalorder %s35, 2
    %s37 = scalar_select %p36, %s35, 2
    %s38 = smul.addr %s37, 8
    %s39 = scalar_lea.vmem %s1, %s38
    %s40 = sadd.s32 0, 0
    %s41 = smul.u32 3, %s40
    %p42 = scmp.lt.s32.totalorder %s41, 2
    %s43 = scalar_select %p42, %s41, 2
    %s44 = smul.addr %s43, 8
    %s45 = scalar_lea.vmem %s0, %s44
    %s46 = sadd.s32 0, 0
    %s47 = smul.u32 3, %s46
    %s48 = sadd.s32 0, 0
    %s49 = smul.u32 3, %s48
    %p50 = scmp.lt.s32.totalorder %s49, 2
    %s51 = scalar_select %p50, %s49, 2
    %s52 = smul.addr %s51, 8
    %s53 = scalar_lea.vmem %s1, %s52
    %s54 = sadd.s32 0, 0
    %s55 = smul.u32 3, %s54
    %p56 = scmp.eq.s32.totalorder 0, 0
    // Predicated region
    $region10: #{weighted_cross_entropy_loss.1} parent=1 // pred_check
      %p57 = pneg %p56
    $region11: #{weighted_cross_entropy_loss.1} parent=1 // pred_check_branch
      %59 = sbr.rel (%p57) target = $region13
    $region12: #{weighted_cross_entropy_loss.1} parent=1 // pred_region
      %vm60 = vcmask 7168
      %61 = vst.msk [vmem:[#allocation2] sm:$0xff] %vm60, 0.0
      %62 = vst.msk [vmem:[#allocation2 + $0x8] sm:$0xff] %vm60, 0.0
      %63 = vst.msk [vmem:[#allocation2 + $0x10] sm:$0xff] %vm60, 0.0
    $region13: #{weighted_cross_entropy_loss.1} parent=1 // pred_fallthru
      _
    %v64 = vld [vmem:[%s45] sm:$0xff]
    %v65 = vld [vmem:[%s45 + $0x8] sm:$0xff]
    %v66 = vld [vmem:[%s45 + $0x10] sm:$0xff]
    %v67 = vld [vmem:[%s53] sm:$0xff]
    %v68 = vld [vmem:[%s53 + $0x8] sm:$0xff]
    %v69 = vld [vmem:[%s53 + $0x10] sm:$0xff]
    %vm73 = vcmask 261120
    %v74 = vsel %vm73, %v64, -inf
    %75 = vmax.xlane.f32.xlu0 %v74
    %v76 = vpop.xlane.xlu0 %75
    %v77 = vsel %vm73, %v65, -inf
    %78 = vmax.xlane.f32.xlu0 %v77
    %v79 = vpop.xlane.xlu0 %78
    %v80 = vsel %vm73, %v66, -inf
    %81 = vmax.xlane.f32.xlu0 %v80
    %v82 = vpop.xlane.xlu0 %81
    %v83 = vsub.f32 %v64, %v76
    %v84 = vsub.f32 %v65, %v79
    %v85 = vsub.f32 %v66, %v82
    %v86 = vmul.f32 %v83, 1.442695
    %v87 = vpow.pop %v86
    %v88 = vmul.f32 %v84, 1.442695
    %v89 = vpow.pop %v88
    %v90 = vmul.f32 %v85, 1.442695
    %v91 = vpow.pop %v90
    %v93 = vsel %vm73, %v87, 0
    %v96 = vsel %vm73, %v89, 0
    %v99 = vsel %vm73, %v91, 0
    %101 = vmatprep.subr.mxu0 0.0
    %102 = vmatpush1.msra.mxu0 1.0
    %103 = vmatprep.subr.mxu0 0.0
    %104 = vmatpush1.msra.mxu0 1.0
    %105 = vmatprep.subr.mxu0 0.0
    %106 = vmatpush1.msra.mxu0 1.0
    %107 = vmatprep.subr.mxu0 0.0
    %108 = vmatpush1.msra.mxu0 1.0
    %109 = vmatprep.subr.mxu0 0.0
    %110 = vmatpush1.msra.mxu0 0.0
    %111 = vmatprep.subr.mxu0 0.0
    %112 = vmatpush1.msra.mxu0 0.0
    %113 = vmatprep.subr.mxu0 0.0
    %114 = vmatpush1.msra.mxu0 0.0
    %115 = vmatprep.subr.mxu0 0.0
    %116 = vmatpush1.msra.mxu0 0.0
    %117 = vmatprep.subr.mxu0 0.0
    %118 = vmatpush1.msra.mxu0 0.0
    %119 = vmatprep.subr.mxu0 0.0
    %120 = vmatpush1.msra.mxu0 0.0
    %121 = vmatprep.subr.mxu0 0.0
    %122 = vmatpush1.msra.mxu0 0.0
    %123 = vmatprep.subr.mxu0 0.0
    %124 = vmatpush1.msra.mxu0 0.0
    %125 = vmatprep.subr.mxu0 0.0
    %126 = vmatpush1.msra.mxu0 0.0
    %127 = vmatprep.subr.mxu0 0.0
    %128 = vmatpush1.msra.mxu0 0.0
    %129 = vmatprep.subr.mxu0 0.0
    %130 = vmatpush1.msra.mxu0 0.0
    %131 = vmatprep.subr.mxu0 0.0
    %132 = vmatpush1.msra.mxu0 0.0
    %133 = vmatprep.subr.mxu0 0.0
    %134 = vmatpush1.msra.mxu0 0.0
    %135 = vmatprep.subr.mxu0 0.0
    %136 = vmatpush1.msra.mxu0 0.0
    %137 = vmatprep.subr.mxu0 0.0
    %138 = vmatpush1.msra.mxu0 0.0
    %139 = vmatprep.subr.mxu0 0.0
    %140 = vmatpush1.msra.mxu0 0.0
    %141 = vmatprep.subr.mxu0 0.0
    %142 = vmatpush1.msra.mxu0 0.0
    %143 = vmatprep.subr.mxu0 0.0
    %144 = vmatpush1.msra.mxu0 0.0
    %145 = vmatprep.subr.mxu0 0.0
    %146 = vmatpush1.msra.mxu0 0.0
    %147 = vmatprep.subr.mxu0 0.0
    %148 = vmatpush1.msra.mxu0 0.0
    %149 = vmatprep.subr.mxu0 0.0
    %150 = vmatpush1.msra.mxu0 0.0
    %151 = vmatprep.subr.mxu0 0.0
    %152 = vmatpush1.msra.mxu0 0.0
    %153 = vmatprep.subr.mxu0 0.0
    %154 = vmatpush1.msra.mxu0 0.0
    %155 = vmatprep.subr.mxu0 0.0
    %156 = vmatpush1.msra.mxu0 0.0
    %157 = vmatprep.subr.mxu0 0.0
    %158 = vmatpush1.msra.mxu0 0.0
    %159 = vmatprep.subr.mxu0 0.0
    %160 = vmatpush1.msra.mxu0 0.0
    %161 = vmatprep.subr.mxu0 0.0
    %162 = vmatpush1.msra.mxu0 0.0
    %163 = vmatprep.subr.mxu0 0.0
    %164 = vmatpush1.msra.mxu0 0.0
    %165 = vmatprep.mubr.f32.mxu0 0.0
    %166 = vmatmul.mubr.f32.gmra.mrb[0].mxu0 %v93
    %v167 = vpop.f32.mrb[0].mxu0
    %v168 = vadd.f32 0.0, %v167
    %v169 = vpop.f32.mrb[0].mxu0
    %170 = vmatprep.mubr.f32.mxu0 0.0
    %171 = vmatmul.mubr.f32.gmra.mrb[0].mxu0 %v96
    %v172 = vpop.f32.mrb[0].mxu0
    %v173 = vadd.f32 0.0, %v172
    %v174 = vpop.f32.mrb[0].mxu0
    %175 = vmatprep.mubr.f32.mxu0 0.0
    %176 = vmatmul.mubr.f32.gmra.mrb[0].mxu0 %v99
    %v177 = vpop.f32.mrb[0].mxu0
    %v178 = vadd.f32 0.0, %v177
    %v179 = vpop.f32.mrb[0].mxu0
    %180 = vdwg.mxu0
    %v181 = vlaneseq
    %v182 = vand.u32 %v181, 127
    %183 = vset.pattern.permute.xlu0 0
    %184 = vperm.xlu0 %183, %v67
    %v185 = vpop.permute.xlu0 %184
    %186 = vset.pattern.permute.xlu0 0
    %187 = vperm.xlu0 %186, %v68
    %v188 = vpop.permute.xlu0 %187
    %189 = vset.pattern.permute.xlu0 0
    %190 = vperm.xlu0 %189, %v69
    %v191 = vpop.permute.xlu0 %190
    %vm192 = vcmp.eq.s32.totalorder %v182, %v185
    %vm193 = vcmp.eq.s32.totalorder %v182, %v188
    %vm194 = vcmp.eq.s32.totalorder %v182, %v191
    %v195 = vsel %vm192, %v83, 0.0
    %v196 = vsel %vm193, %v84, 0.0
    %v197 = vsel %vm194, %v85, 0.0
    %v199 = vsel %vm73, %v195, 0
    %v202 = vsel %vm73, %v196, 0
    %v205 = vsel %vm73, %v197, 0
    %207 = vmatprep.subr.mxu0 0.0
    %208 = vmatpush1.msra.mxu0 1.0
    %209 = vmatprep.subr.mxu0 0.0
    %210 = vmatpush1.msra.mxu0 1.0
    %211 = vmatprep.subr.mxu0 0.0
    %212 = vmatpush1.msra.mxu0 1.0
    %213 = vmatprep.subr.mxu0 0.0
    %214 = vmatpush1.msra.mxu0 1.0
    %215 = vmatprep.subr.mxu0 0.0
    %216 = vmatpush1.msra.mxu0 0.0
    %217 = vmatprep.subr.mxu0 0.0
    %218 = vmatpush1.msra.mxu0 0.0
    %219 = vmatprep.subr.mxu0 0.0
    %220 = vmatpush1.msra.mxu0 0.0
    %221 = vmatprep.subr.mxu0 0.0
    %222 = vmatpush1.msra.mxu0 0.0
    %223 = vmatprep.subr.mxu0 0.0
    %224 = vmatpush1.msra.mxu0 0.0
    %225 = vmatprep.subr.mxu0 0.0
    %226 = vmatpush1.msra.mxu0 0.0
    %227 = vmatprep.subr.mxu0 0.0
    %228 = vmatpush1.msra.mxu0 0.0
    %229 = vmatprep.subr.mxu0 0.0
    %230 = vmatpush1.msra.mxu0 0.0
    %231 = vmatprep.subr.mxu0 0.0
    %232 = vmatpush1.msra.mxu0 0.0
    %233 = vmatprep.subr.mxu0 0.0
    %234 = vmatpush1.msra.mxu0 0.0
    %235 = vmatprep.subr.mxu0 0.0
    %236 = vmatpush1.msra.mxu0 0.0
    %237 = vmatprep.subr.mxu0 0.0
    %238 = vmatpush1.msra.mxu0 0.0
    %239 = vmatprep.subr.mxu0 0.0
    %240 = vmatpush1.msra.mxu0 0.0
    %241 = vmatprep.subr.mxu0 0.0
    %242 = vmatpush1.msra.mxu0 0.0
    %243 = vmatprep.subr.mxu0 0.0
    %244 = vmatpush1.msra.mxu0 0.0
    %245 = vmatprep.subr.mxu0 0.0
    %246 = vmatpush1.msra.mxu0 0.0
    %247 = vmatprep.subr.mxu0 0.0
    %248 = vmatpush1.msra.mxu0 0.0
    %249 = vmatprep.subr.mxu0 0.0
    %250 = vmatpush1.msra.mxu0 0.0
    %251 = vmatprep.subr.mxu0 0.0
    %252 = vmatpush1.msra.mxu0 0.0
    %253 = vmatprep.subr.mxu0 0.0
    %254 = vmatpush1.msra.mxu0 0.0
    %255 = vmatprep.subr.mxu0 0.0
    %256 = vmatpush1.msra.mxu0 0.0
    %257 = vmatprep.subr.mxu0 0.0
    %258 = vmatpush1.msra.mxu0 0.0
    %259 = vmatprep.subr.mxu0 0.0
    %260 = vmatpush1.msra.mxu0 0.0
    %261 = vmatprep.subr.mxu0 0.0
    %262 = vmatpush1.msra.mxu0 0.0
    %263 = vmatprep.subr.mxu0 0.0
    %264 = vmatpush1.msra.mxu0 0.0
    %265 = vmatprep.subr.mxu0 0.0
    %266 = vmatpush1.msra.mxu0 0.0
    %267 = vmatprep.subr.mxu0 0.0
    %268 = vmatpush1.msra.mxu0 0.0
    %269 = vmatprep.subr.mxu0 0.0
    %270 = vmatpush1.msra.mxu0 0.0
    %271 = vmatprep.mubr.f32.mxu0 0.0
    %272 = vmatmul.mubr.f32.gmra.mrb[0].mxu0 %v199
    %v273 = vpop.f32.mrb[0].mxu0
    %v274 = vadd.f32 0.0, %v273
    %v275 = vpop.f32.mrb[0].mxu0
    %276 = vmatprep.mubr.f32.mxu0 0.0
    %277 = vmatmul.mubr.f32.gmra.mrb[0].mxu0 %v202
    %v278 = vpop.f32.mrb[0].mxu0
    %v279 = vadd.f32 0.0, %v278
    %v280 = vpop.f32.mrb[0].mxu0
    %281 = vmatprep.mubr.f32.mxu0 0.0
    %282 = vmatmul.mubr.f32.gmra.mrb[0].mxu0 %v205
    %v283 = vpop.f32.mrb[0].mxu0
    %v284 = vadd.f32 0.0, %v283
    %v285 = vpop.f32.mrb[0].mxu0
    %286 = vdwg.mxu0
    %v287 = vlog2.pop %v168
    %v288 = vmul.f32 %v287, 0.6931472
    %v289 = vlog2.pop %v173
    %v290 = vmul.f32 %v289, 0.6931472
    %v291 = vlog2.pop %v178
    %v292 = vmul.f32 %v291, 0.6931472
    %v293 = vsub.f32 %v288, %v274
    %v294 = vsub.f32 %v290, %v279
    %v295 = vsub.f32 %v292, %v284
    %v296 = vld [vmem:[#allocation2] sm:$0xff]
    %v297 = vld [vmem:[#allocation2 + $0x8] sm:$0xff]
    %v298 = vld [vmem:[#allocation2 + $0x10] sm:$0xff]
    %302 = vrot.lane.b32.xlu0 %v293, 1
    %v303 = vpop.permute.xlu0 %302
    %304 = vrot.lane.b32.xlu0 %v294, 1
    %v305 = vpop.permute.xlu0 %304
    %306 = vrot.lane.b32.xlu0 %v295, 1
    %v307 = vpop.permute.xlu0 %306
    %v311 = vmul.f32 %v67, %v303
    %v312 = vmul.f32 %v68, %v305
    %v313 = vmul.f32 %v69, %v307
    %317 = vrot.lane.b32.xlu0 %v311, 127
    %v318 = vpop.permute.xlu0 %317
    %319 = vrot.lane.b32.xlu0 %v312, 127
    %v320 = vpop.permute.xlu0 %319
    %321 = vrot.lane.b32.xlu0 %v313, 127
    %v322 = vpop.permute.xlu0 %321
    %v326 = vadd.f32 %v296, %v318
    %v327 = vadd.f32 %v297, %v320
    %v328 = vadd.f32 %v298, %v322
    %vm329 = vcmask 7168
    %330 = vst.msk [vmem:[#allocation2] sm:$0xff] %vm329, %v326
    %331 = vst.msk [vmem:[#allocation2 + $0x8] sm:$0xff] %vm329, %v327
    %332 = vst.msk [vmem:[#allocation2 + $0x10] sm:$0xff] %vm329, %v328
    // Predicated region
    $region14: #{weighted_cross_entropy_loss.1} parent=1 // pred_check
      %p333 = pneg %p56
    $region15: #{weighted_cross_entropy_loss.1} parent=1 // pred_check_branch
      %335 = sbr.rel (%p333) target = $region17
    $region16: #{weighted_cross_entropy_loss.1} parent=1 // pred_region
      %v336 = vld [vmem:[#allocation2] sm:$0xff]
      %v337 = vld [vmem:[#allocation2 + $0x8] sm:$0xff]
      %v338 = vld [vmem:[#allocation2 + $0x10] sm:$0xff]
      %v339 = vsel %vm329, %v336, 0.0
      %v340 = vsel %vm329, %v337, 0.0
      %v341 = vadd.f32 %v339, %v340
      %v342 = vsel %vm329, %v338, 0.0
      %v343 = vadd.f32 %v341, %v342
      %v344 = vrot.slane %v343, 4
      %v345 = vadd.f32 %v343, %v344
      %v346 = vrot.slane %v345, 2
      %v347 = vadd.f32 %v345, %v346
      %v348 = vrot.slane %v347, 1
      %v349 = vadd.f32 %v347, %v348
      %vm350 = vcmask 0
      %351 = vst.msk [vmem:[#allocation3] sm:$0x1] %vm350, %v349
    $region17: #{weighted_cross_entropy_loss.1} parent=1 // pred_fallthru
      _
    // Predicated region
    $region18: #{weighted_cross_entropy_loss.1} parent=1 // pred_check
      _
    $region19: #{weighted_cross_entropy_loss.1} parent=1 // pred_check_branch
      %353 = sbr.rel (0) target = $region21
    $region20: #{weighted_cross_entropy_loss.1} parent=1 // pred_region
      %s355 = ssub.s32 16, 16
      %356 = vsyncadd [#allocation4], %s355
      %s358 = sshll.u32 [#allocation3], 4
      %s359 = int_to_ptr.vmem [resolvable:$true] %s358
      %361 = dma.vmem_to_hbm [thread:$0]  %s359, 16, %s2, [#allocation4]
    $region21: #{weighted_cross_entropy_loss.1} parent=1 // pred_fallthru
      _
    // Predicated region
    $region22: #{weighted_cross_entropy_loss.1} parent=1 // pred_check
      _
    $region23: #{weighted_cross_entropy_loss.1} parent=1 // pred_check_branch
      %363 = sbr.rel (0) target = $region25
    $region24: #{weighted_cross_entropy_loss.1} parent=1 // pred_region
      %364 = dma.done [#allocation4], 16
    $region25: #{weighted_cross_entropy_loss.1} parent=1 // pred_fallthru
      _
    %365 = vsyncpa [#allocation4], 1

</llo_original>
